<compile_context>
chip_gen: v7x
topology: tpu7x:2x2x1
jax: 0.10.0
libtpu: 0.0.40
codegen_flags: <defaults>
</compile_context>

<pallas_src>
import functools

import jax
import jax.numpy as jnp
from jax.experimental import pallas as pl
from jax.experimental.pallas import tpu as pltpu


def _embedding_kernel(x_ref, o_ref, *, schedule):
    """One flat tile.

    x_ref: (block_rows, 128)           flattened batch*channel elements
    o_ref: (2*F+1, block_rows, 128)    part-major output slabs
    schedule: static tuple of (freq, use_double_angle) pairs (unrolled).
    """
    x = x_ref[...].astype(jnp.float32)
    o_ref[0, :, :] = x.astype(o_ref.dtype)
    s = None
    c = None
    for i, (f, doubled) in enumerate(schedule):
        if doubled:
            # sin(2a) = 2*sin(a)*cos(a); cos(2a) = 1 - 2*sin(a)^2  (VPU only)
            s, c = 2.0 * s * c, 1.0 - 2.0 * s * s
        else:
            fx = f * x
            s = jnp.sin(fx)
            c = jnp.cos(fx)
        o_ref[2 * i + 1, :, :] = s.astype(o_ref.dtype)
        o_ref[2 * i + 2, :, :] = c.astype(o_ref.dtype)


def make_embedding(in_channels, N_freqs, logscale=True, *, block_rows=512,
                   use_recurrence=True, anchor_period=3, out_dtype=None,
                   torch_layout=True):
    """Returns (embed_fn, freq_bands, out_channels).

    embed_fn: (B, in_channels) -> (B, in_channels * (2*N_freqs + 1)) when
              torch_layout=True (matches the PyTorch module), otherwise the
              transpose-free (2*N_freqs + 1, B, in_channels) layout.
    block_rows: tile height of the flattened (rows, 128) view; multiple of 8.
    anchor_period: exact sin/cos every `anchor_period` octaves; the rest use
              the double-angle recurrence (logscale only).
    """
    if logscale:
        freq_bands = 2.0 ** jnp.linspace(0.0, N_freqs - 1, N_freqs)
    else:
        freq_bands = jnp.linspace(1.0, 2.0 ** (N_freqs - 1), N_freqs)
    freqs = tuple(float(f) for f in freq_bands)  # static, baked into kernel
    n_parts = 2 * N_freqs + 1
    out_channels = in_channels * n_parts
    assert block_rows > 0 and block_rows % 8 == 0, "block_rows % 8 must be 0"
    assert anchor_period >= 1

    # Static schedule: a frequency uses the double-angle recurrence iff it is
    # exactly 2x the previous one and we are within `anchor_period` of the
    # last exact (anchor) evaluation.  Non-logscale bands fall back to exact.
    schedule = []
    prev_f = None
    since_anchor = 0
    for f in freqs:
        if (use_recurrence and prev_f is not None and f == 2.0 * prev_f
                and since_anchor < anchor_period - 1):
            schedule.append((f, True))
            since_anchor += 1
        else:
            schedule.append((f, False))
            since_anchor = 0
        prev_f = f
    schedule = tuple(schedule)

    kernel = functools.partial(_embedding_kernel, schedule=schedule)

    def embed(x):
        B, C = x.shape
        assert C == in_channels
        dtype = out_dtype if out_dtype is not None else x.dtype

        total = B * C
        rows = pl.cdiv(total, 128)
        br = block_rows
        if rows < 2 * br:
            # Shrink the tile for small inputs so we still get >=2 grid steps
            # (v7x megacore) without excessive padding.
            br = max(8, (((rows + 1) // 2) + 7) // 8 * 8)
        num_tiles = pl.cdiv(rows, br)
        padded = num_tiles * br * 128

        # Layout plumbing: flatten (B, C) row-major (free) and pad the ragged
        # tail with zeros; the kernel then works on dense (br, 128) tiles.
        x_flat = x.reshape(total)
        if padded != total:
            x_flat = jnp.pad(x_flat, (0, padded - total))
        x2 = x_flat.reshape(num_tiles * br, 128)

        # Double-buffered working set; raise the scoped-VMEM limit only if an
        # unusually large block_rows pushes past the ~32 MiB default.
        out_itemsize = jnp.dtype(dtype).itemsize
        in_itemsize = jnp.dtype(x.dtype).itemsize
        vmem_needed = 2 * br * 128 * (in_itemsize + n_parts * out_itemsize)
        cp_kwargs = dict(dimension_semantics=("parallel",))
        if vmem_needed > 30 * 1024 * 1024:
            cp_kwargs["vmem_limit_bytes"] = int(vmem_needed * 1.25)

        out3 = pl.pallas_call(
            kernel,
            out_shape=jax.ShapeDtypeStruct((n_parts, num_tiles * br, 128),
                                           dtype),
            grid_spec=pltpu.PrefetchScalarGridSpec(
                num_scalar_prefetch=0,
                grid=(num_tiles,),
                # Last two dims of every block are (multiple-of-8, 128) or
                # the full array dim -> (8,128) tiling constraint satisfied.
                in_specs=[pl.BlockSpec((br, 128), lambda i: (i, 0))],
                out_specs=pl.BlockSpec((n_parts, br, 128),
                                       lambda i: (0, i, 0)),
            ),
            compiler_params=pltpu.CompilerParams(**cp_kwargs),
        )(x2)

        # Drop the padding BEFORE any transpose (contiguous slice/reshape).
        out = out3.reshape(n_parts, padded)[:, :total].reshape(n_parts, B, C)
        if not torch_layout:
            # Transpose-free layout; torch columns are recovered by
            # out.transpose(1, 0, 2).reshape(B, out_channels) downstream.
            return out
        # PyTorch column order [x, sin(f0 x), cos(f0 x), sin(f1 x), ...].
        return jnp.transpose(out, (1, 0, 2)).reshape(B, out_channels)

    return embed, freq_bands, out_channels


def _reference_embed(x, freq_bands):
    out = [x]
    for f in freq_bands:
        out.append(jnp.sin(f * x))
        out.append(jnp.cos(f * x))
    return jnp.concatenate(out, axis=-1)


if __name__ == "__main__":
    key0, key1 = jax.random.split(jax.random.PRNGKey(0))

    # 1) Small-shape correctness test (recurrence enabled, default path).
    in_c, nf, B = 3, 4, 100
    x_small = jax.random.normal(key0, (B, in_c), dtype=jnp.float32)
    embed, fb, oc = make_embedding(in_c, nf, logscale=True)
    out = jax.block_until_ready(embed(x_small))
    assert out.shape == (B, oc), out.shape
    ref = _reference_embed(x_small, fb)
    assert jnp.allclose(out, ref, atol=1e-5, rtol=1e-5), "small-config mismatch"

    # 2) Typical NeRF config (3, 10), exact sin/cos mode: same math as ref.
    in_c, nf, B = 3, 10, 300
    x_big = jax.random.normal(key1, (B, in_c), dtype=jnp.float32)
    embed_exact, fb10, oc10 = make_embedding(in_c, nf, logscale=True,
                                             use_recurrence=False)
    out_exact = jax.block_until_ready(embed_exact(x_big))
    assert out_exact.shape == (B, oc10), out_exact.shape
    ref10 = _reference_embed(x_big, fb10)
    assert jnp.allclose(out_exact, ref10, atol=1e-5, rtol=1e-5), \
        "exact-mode mismatch vs reference"

    # 3) Typical config with the anchored double-angle recurrence.  Doubled
    # octaves evaluate sin/cos of args up to ~2^9*|x| along a different (but
    # mathematically identical) path than the reference, so leave headroom
    # for the reference's own f32 argument-reduction error at large args.
    embed_rec, _, _ = make_embedding(in_c, nf, logscale=True,
                                     use_recurrence=True, anchor_period=3)
    out_rec = jax.block_until_ready(embed_rec(x_big))
    max_err = float(jnp.max(jnp.abs(out_rec - ref10)))
    assert max_err < 1e-3, f"recurrence-mode max abs error {max_err}"

    print("KERNEL_OK")
</pallas_src>

<mosaic_0001>
module attributes {stable_mosaic.version = 11 : i64} {
  func.func @_embedding_kernel(%arg0: i32, %arg1: memref<8x128xf32, #tpu.memory_space<vmem>>, %arg2: memref<9x8x128xf32, #tpu.memory_space<vmem>>) attributes {dimension_semantics = [#tpu.dimension_semantics<parallel>], iteration_bounds = array<i64: 1>, scalar_prefetch = 0 : i64, scratch_operands = 0 : i64, tpu.core_type = #tpu.core_type<tc>, window_params = [{transform_indices = @transform_0, window_bounds = array<i64: 8, 128>}, {transform_indices = @transform_1, window_bounds = array<i64: 9, 8, 128>}]} {
    %c0 = arith.constant 0 : index
    %c0_0 = arith.constant 0 : index
    %0 = vector.load %arg1[%c0, %c0_0] : memref<8x128xf32, #tpu.memory_space<vmem>>, vector<8x128xf32>
    %c0_1 = arith.constant 0 : index
    %c0_2 = arith.constant 0 : index
    %c0_3 = arith.constant 0 : index
    %1 = vector.load %arg2[%c0_1, %c0_2, %c0_3] : memref<9x8x128xf32, #tpu.memory_space<vmem>>, vector<1x8x128xf32>
    %2 = vector.shape_cast %1 : vector<1x8x128xf32> to vector<8x128xf32>
    %3 = vector.shape_cast %0 : vector<8x128xf32> to vector<1x8x128xf32>
    tpu.vector_store %arg2[%c0_1, %c0_2, %c0_3], %3 {strides = array<i32>} : memref<9x8x128xf32, #tpu.memory_space<vmem>>, vector<1x8x128xf32>,
    %cst = arith.constant 1.000000e+00 : f32
    %4 = vector.broadcast %cst : f32 to vector<8x128xf32>
    %5 = arith.mulf %4, %0 : vector<8x128xf32>
    %6 = math.sin %5 : vector<8x128xf32>
    %7 = math.cos %5 : vector<8x128xf32>
    %c1 = arith.constant 1 : index
    %c0_4 = arith.constant 0 : index
    %c0_5 = arith.constant 0 : index
    %8 = vector.load %arg2[%c1, %c0_4, %c0_5] : memref<9x8x128xf32, #tpu.memory_space<vmem>>, vector<1x8x128xf32>
    %9 = vector.shape_cast %8 : vector<1x8x128xf32> to vector<8x128xf32>
    %10 = vector.shape_cast %6 : vector<8x128xf32> to vector<1x8x128xf32>
    tpu.vector_store %arg2[%c1, %c0_4, %c0_5], %10 {strides = array<i32>} : memref<9x8x128xf32, #tpu.memory_space<vmem>>, vector<1x8x128xf32>,
    %c2 = arith.constant 2 : index
    %c0_6 = arith.constant 0 : index
    %c0_7 = arith.constant 0 : index
    %11 = vector.load %arg2[%c2, %c0_6, %c0_7] : memref<9x8x128xf32, #tpu.memory_space<vmem>>, vector<1x8x128xf32>
    %12 = vector.shape_cast %11 : vector<1x8x128xf32> to vector<8x128xf32>
    %13 = vector.shape_cast %7 : vector<8x128xf32> to vector<1x8x128xf32>
    tpu.vector_store %arg2[%c2, %c0_6, %c0_7], %13 {strides = array<i32>} : memref<9x8x128xf32, #tpu.memory_space<vmem>>, vector<1x8x128xf32>,
    %cst_8 = arith.constant 2.000000e+00 : f32
    %14 = vector.broadcast %cst_8 : f32 to vector<8x128xf32>
    %15 = arith.mulf %14, %6 : vector<8x128xf32>
    %16 = arith.mulf %15, %7 : vector<8x128xf32>
    %cst_9 = arith.constant 2.000000e+00 : f32
    %17 = vector.broadcast %cst_9 : f32 to vector<8x128xf32>
    %18 = arith.mulf %17, %6 : vector<8x128xf32>
    %19 = arith.mulf %18, %6 : vector<8x128xf32>
    %cst_10 = arith.constant 1.000000e+00 : f32
    %20 = vector.broadcast %cst_10 : f32 to vector<8x128xf32>
    %21 = arith.subf %20, %19 : vector<8x128xf32>
    %c3 = arith.constant 3 : index
    %c0_11 = arith.constant 0 : index
    %c0_12 = arith.constant 0 : index
    %22 = vector.load %arg2[%c3, %c0_11, %c0_12] : memref<9x8x128xf32, #tpu.memory_space<vmem>>, vector<1x8x128xf32>
    %23 = vector.shape_cast %22 : vector<1x8x128xf32> to vector<8x128xf32>
    %24 = vector.shape_cast %16 : vector<8x128xf32> to vector<1x8x128xf32>
    tpu.vector_store %arg2[%c3, %c0_11, %c0_12], %24 {strides = array<i32>} : memref<9x8x128xf32, #tpu.memory_space<vmem>>, vector<1x8x128xf32>,
    %c4 = arith.constant 4 : index
    %c0_13 = arith.constant 0 : index
    %c0_14 = arith.constant 0 : index
    %25 = vector.load %arg2[%c4, %c0_13, %c0_14] : memref<9x8x128xf32, #tpu.memory_space<vmem>>, vector<1x8x128xf32>
    %26 = vector.shape_cast %25 : vector<1x8x128xf32> to vector<8x128xf32>
    %27 = vector.shape_cast %21 : vector<8x128xf32> to vector<1x8x128xf32>
    tpu.vector_store %arg2[%c4, %c0_13, %c0_14], %27 {strides = array<i32>} : memref<9x8x128xf32, #tpu.memory_space<vmem>>, vector<1x8x128xf32>,
    %cst_15 = arith.constant 2.000000e+00 : f32
    %28 = vector.broadcast %cst_15 : f32 to vector<8x128xf32>
    %29 = arith.mulf %28, %16 : vector<8x128xf32>
    %30 = arith.mulf %29, %21 : vector<8x128xf32>
    %cst_16 = arith.constant 2.000000e+00 : f32
    %31 = vector.broadcast %cst_16 : f32 to vector<8x128xf32>
    %32 = arith.mulf %31, %16 : vector<8x128xf32>
    %33 = arith.mulf %32, %16 : vector<8x128xf32>
    %cst_17 = arith.constant 1.000000e+00 : f32
    %34 = vector.broadcast %cst_17 : f32 to vector<8x128xf32>
    %35 = arith.subf %34, %33 : vector<8x128xf32>
    %c5 = arith.constant 5 : index
    %c0_18 = arith.constant 0 : index
    %c0_19 = arith.constant 0 : index
    %36 = vector.load %arg2[%c5, %c0_18, %c0_19] : memref<9x8x128xf32, #tpu.memory_space<vmem>>, vector<1x8x128xf32>
    %37 = vector.shape_cast %36 : vector<1x8x128xf32> to vector<8x128xf32>
    %38 = vector.shape_cast %30 : vector<8x128xf32> to vector<1x8x128xf32>
    tpu.vector_store %arg2[%c5, %c0_18, %c0_19], %38 {strides = array<i32>} : memref<9x8x128xf32, #tpu.memory_space<vmem>>, vector<1x8x128xf32>,
    %c6 = arith.constant 6 : index
    %c0_20 = arith.constant 0 : index
    %c0_21 = arith.constant 0 : index
    %39 = vector.load %arg2[%c6, %c0_20, %c0_21] : memref<9x8x128xf32, #tpu.memory_space<vmem>>, vector<1x8x128xf32>
    %40 = vector.shape_cast %39 : vector<1x8x128xf32> to vector<8x128xf32>
    %41 = vector.shape_cast %35 : vector<8x128xf32> to vector<1x8x128xf32>
    tpu.vector_store %arg2[%c6, %c0_20, %c0_21], %41 {strides = array<i32>} : memref<9x8x128xf32, #tpu.memory_space<vmem>>, vector<1x8x128xf32>,
    %cst_22 = arith.constant 8.000000e+00 : f32
    %42 = vector.broadcast %cst_22 : f32 to vector<8x128xf32>
    %43 = arith.mulf %42, %0 : vector<8x128xf32>
    %44 = math.sin %43 : vector<8x128xf32>
    %45 = math.cos %43 : vector<8x128xf32>
    %c7 = arith.constant 7 : index
    %c0_23 = arith.constant 0 : index
    %c0_24 = arith.constant 0 : index
    %46 = vector.load %arg2[%c7, %c0_23, %c0_24] : memref<9x8x128xf32, #tpu.memory_space<vmem>>, vector<1x8x128xf32>
    %47 = vector.shape_cast %46 : vector<1x8x128xf32> to vector<8x128xf32>
    %48 = vector.shape_cast %44 : vector<8x128xf32> to vector<1x8x128xf32>
    tpu.vector_store %arg2[%c7, %c0_23, %c0_24], %48 {strides = array<i32>} : memref<9x8x128xf32, #tpu.memory_space<vmem>>, vector<1x8x128xf32>,
    %c8 = arith.constant 8 : index
    %c0_25 = arith.constant 0 : index
    %c0_26 = arith.constant 0 : index
    %49 = vector.load %arg2[%c8, %c0_25, %c0_26] : memref<9x8x128xf32, #tpu.memory_space<vmem>>, vector<1x8x128xf32>
    %50 = vector.shape_cast %49 : vector<1x8x128xf32> to vector<8x128xf32>
    %51 = vector.shape_cast %45 : vector<8x128xf32> to vector<1x8x128xf32>
    tpu.vector_store %arg2[%c8, %c0_25, %c0_26], %51 {strides = array<i32>} : memref<9x8x128xf32, #tpu.memory_space<vmem>>, vector<1x8x128xf32>,
    return
  }
  func.func @transform_0(%arg0: i32) -> (i32, i32) {
    %c0_i32 = arith.constant 0 : i32
    %c0_i32_0 = arith.constant 0 : i32
    return %arg0, %c0_i32 : i32, i32
  }
  func.func @transform_1(%arg0: i32) -> (i32, i32, i32) {
    %c0_i32 = arith.constant 0 : i32
    %c0_i32_0 = arith.constant 0 : i32
    %c0_i32_1 = arith.constant 0 : i32
    return %c0_i32, %arg0, %c0_i32_0 : i32, i32, i32
  }
}

</mosaic_0001>

<llo_original>
// kernel: tpu_custom_call.1
$region0: #{tpu_custom_call.1}
  #allocation0 [shape = 'u32[]', space=smem, size = 0x4, offset = 0x4, fixed_abs, tag = 'smem constant byte address 0x4 - core index']
  #allocation1 [shape = 'u32[144,128]{1,0:T(1,128)}', space=vmem, size = 0x12000, scoped, tag = 'internal scratch']
  %s0 = inlined_call_operand.hbm [shape: f32[8,128], index: 0, kind: input, shape index: {}]
  %s1 = inlined_call_operand.hbm [shape: f32[9,8,128], index: 1, kind: output, shape index: {}]
  %s2 = sld [smem:[#allocation0]]
  $region18: #{tpu_custom_call.1} parent=0
    _
  %s4 = ssub.s32 1, %s2
  %s5 = scalar_select 0, %s4, %s2
  $region1: #{tpu_custom_call.1} parent=0
    #allocation2 [shape = 'u8[4096]{0}', space=vmem, size = 0x1000, scoped, tag = 'input window, operand 0, single buffered']
    #allocation3 [shape = 's32[1]{0}', space=sflag, size = 0x4, scoped, tag = 'scoped memory for tpu_custom_call.1']
    #allocation4 [shape = 's32[1]{0}', space=sflag, size = 0x4, scoped, tag = 'scoped memory for tpu_custom_call.1']
    #allocation5 [shape = 'u8[36864]{0}', space=vmem, size = 0x9000, scoped, tag = 'output window, operand 0, single buffered']
    %6 = vsyncpa [#allocation3], 0
    %7 = vsyncpa [#allocation4], 0
    // Predicated region
    $region2: #{tpu_custom_call.1} parent=1 // pred_check
      _
    $region3: #{tpu_custom_call.1} parent=1 // pred_check_branch
      %9 = sbr.rel (0) target = $region5
    $region4: #{tpu_custom_call.1} parent=1 // pred_region
      %s11 = ssub.s32 128, 128
      %12 = vsyncadd [#allocation3], %s11
      %s14 = sshll.u32 [#allocation2], 4
      %s15 = int_to_ptr.vmem [resolvable:$true] %s14
      %17 = dma.hbm_to_vmem [thread:$0]  %s0, 128, %s15, [#allocation3]
    $region5: #{tpu_custom_call.1} parent=1 // pred_fallthru
      _
    // Predicated region
    $region6: #{tpu_custom_call.1} parent=1 // pred_check
      _
    $region7: #{tpu_custom_call.1} parent=1 // pred_check_branch
      %19 = sbr.rel (0) target = $region9
    $region8: #{tpu_custom_call.1} parent=1 // pred_region
      %20 = dma.done [#allocation3], 128
    $region9: #{tpu_custom_call.1} parent=1 // pred_fallthru
      _
    %v21 = vld [vmem:[#allocation2] sm:$0xff]
    %22 = vst [vmem:[#allocation5] sm:$0xff] %v21
    %v23 = vand.u32 2147483647, %v21
    %vm24 = vcmp.le.f32.partialorder %v23, 0.7853982
    %vm25 = vcmp.lt.s32.totalorder %v21, 0
    %v26 = vand.u32 %v21, 2139095040
    %v27 = vshrl.u32 %v26, 23
    %v28 = vsub.s32 %v27, 127
    %v29 = vand.u32 2147483647, %v21
    %v30 = vand.u32 %v29, 8388607
    %v31 = vor.u32 %v30, 8388608
    %v32 = vsub.s32 0, %v31
    %v33 = vadd.s32 %v28, 1
    %vm34 = vcmp.gt.s32.totalorder %v33, 0
    %v35 = vsel %vm34, %v33, 0
    %v36 = vshrl.u32 %v35, 5
    %v37 = vand.u32 %v35, 31
    %v38 = vsub.s32 32, %v37
    %v39 = vshrl.u32 683565275, %v38
    %v40 = vshll.u32 683565275, %v37
    %v41 = vshrl.u32 2475754826, %v38
    %v42 = vor.u32 %v40, %v41
    %v43 = vshll.u32 2475754826, %v37
    %v44 = vshrl.u32 2131351028, %v38
    %v45 = vor.u32 %v43, %v44
    %v46 = vshll.u32 2131351028, %v37
    %v47 = vshrl.u32 2102212464, %v38
    %v48 = vor.u32 %v46, %v47
    %v49 = vshll.u32 2102212464, %v37
    %v50 = vshrl.u32 920167782, %v38
    %v51 = vor.u32 %v49, %v50
    %v52 = vshll.u32 920167782, %v37
    %v53 = vshrl.u32 1326507024, %v38
    %v54 = vor.u32 %v52, %v53
    %vm55 = vcmp.lt.s32.totalorder %v36, 1
    %vm56 = vcmp.lt.s32.totalorder %v36, 2
    %vm57 = vcmp.lt.s32.totalorder %v36, 3
    %vm58 = vcmp.lt.s32.totalorder %v36, 4
    %v59 = vsel %vm55, %v39, %v42
    %v60 = vsel %vm58, %v48, 2102212464
    %v61 = vsel %vm57, %v45, %v60
    %v62 = vsel %vm56, %v59, %v61
    %v63 = vsel %vm55, %v42, %v45
    %v64 = vsel %vm58, %v51, 920167782
    %v65 = vsel %vm57, %v48, %v64
    %v66 = vsel %vm56, %v63, %v65
    %v67 = vsel %vm55, %v45, %v48
    %v68 = vsel %vm58, %v54, 1326507024
    %v69 = vsel %vm57, %v51, %v68
    %v70 = vsel %vm56, %v67, %v69
    %v71 = vshll.u32 %v31, 8
    %v72 = vmul.u32.u64.compose %v71, %v70
    %v73 = vextract.low.u32 %v72
    %v74 = vextract.high.u32 %v72
    %v75 = vmul.u32.u64.compose %v71, %v66
    %v76 = vextract.low.u32 %v75
    %v77 = vextract.high.u32 %v75
    %v78 = vmul.u32 %v71, %v62
    %v79 = vadd.s32 %v74, %v76
    %vm80 = vc.u32 %v74, %v76
    %v81 = vadd.s32 %v77, 1
    %v82 = vsel %vm80, %v81, %v77
    %v83 = vadd.s32 %v78, %v82
    %v84 = vadd.s32 %v83, 536870912
    %v85 = vshrl.u32 %v84, 30
    %v86 = vshll.u32 %v85, 30
    %v87 = vsub.s32 %v83, %v86
    %vm88 = vcmp.lt.s32.totalorder %v87, 0
    %v89 = vsub.s32 0, %v87
    %v90 = vsel %vm88, %v89, %v87
    %v91 = vclz %v90
    %v92 = vsub.s32 %v91, 2
    %vm93 = vcmp.gt.s32.totalorder 0, %v92
    %v94 = vsel %vm93, 0, %v92
    %v95 = vsub.s32 32, %v94
    %v96 = vshll.u32 %v87, %v94
    %v97 = vshrl.u32 %v79, %v95
    %v98 = vor.u32 %v96, %v97
    %v99 = vsub.s32 4294967266, %v94
    %v100 = vadd.s32 %v99, 127
    %v101 = vshll.u32 %v100, 23
    %v102 = vor.u32 4788187, %v101
    %v103 = vand.u32 2147483647, %v102
    %v105 = vcvt.s32.f32 %v98
    %v106 = vmul.f32 %v105, %v103
    %v107 = vxor.u32 %v106, 2147483648
    %v108 = vsel %vm25, %v107, %v106
    %v109 = vsub.s32 4, %v85
    %v110 = vsel %vm25, %v109, %v85
    %v111 = vsel %vm24, %v21, %v108
    %v112 = vsel %vm24, 0, %v110
    %v113 = vcosq.f32.pop %v111
    %v114 = vsinq.f32.pop %v111
    %vm115 = vweird.f32 %v21
    %v116 = vadd.s32 %v112, 3
    %v117 = vand.u32 %v116, 3
    %vm118 = vcmp.lt.s32.totalorder %v117, 2
    %vm119 = vcmp.eq.s32.totalorder %v117, 0
    %v120 = vxor.u32 %v114, 2147483648
    %v121 = vsel %vm119, %v113, %v120
    %vm122 = vcmp.eq.s32.totalorder %v117, 2
    %v123 = vxor.u32 %v113, 2147483648
    %v124 = vsel %vm122, %v123, %v114
    %v125 = vsel %vm118, %v121, %v124
    %v126 = vsel %vm115, nan, %v125
    %v127 = vand.u32 2147483647, %v21
    %vm128 = vcmp.le.f32.partialorder %v127, 0.7853982
    %vm129 = vcmp.lt.s32.totalorder %v21, 0
    %v130 = vand.u32 %v21, 2139095040
    %v131 = vshrl.u32 %v130, 23
    %v132 = vsub.s32 %v131, 127
    %v133 = vand.u32 2147483647, %v21
    %v134 = vand.u32 %v133, 8388607
    %v135 = vor.u32 %v134, 8388608
    %v136 = vsub.s32 0, %v135
    %v137 = vadd.s32 %v132, 1
    %vm138 = vcmp.gt.s32.totalorder %v137, 0
    %v139 = vsel %vm138, %v137, 0
    %v140 = vshrl.u32 %v139, 5
    %v141 = vand.u32 %v139, 31
    %v142 = vsub.s32 32, %v141
    %v143 = vshrl.u32 683565275, %v142
    %v144 = vshll.u32 683565275, %v141
    %v145 = vshrl.u32 2475754826, %v142
    %v146 = vor.u32 %v144, %v145
    %v147 = vshll.u32 2475754826, %v141
    %v148 = vshrl.u32 2131351028, %v142
    %v149 = vor.u32 %v147, %v148
    %v150 = vshll.u32 2131351028, %v141
    %v151 = vshrl.u32 2102212464, %v142
    %v152 = vor.u32 %v150, %v151
    %v153 = vshll.u32 2102212464, %v141
    %v154 = vshrl.u32 920167782, %v142
    %v155 = vor.u32 %v153, %v154
    %v156 = vshll.u32 920167782, %v141
    %v157 = vshrl.u32 1326507024, %v142
    %v158 = vor.u32 %v156, %v157
    %vm159 = vcmp.lt.s32.totalorder %v140, 1
    %vm160 = vcmp.lt.s32.totalorder %v140, 2
    %vm161 = vcmp.lt.s32.totalorder %v140, 3
    %vm162 = vcmp.lt.s32.totalorder %v140, 4
    %v163 = vsel %vm159, %v143, %v146
    %v164 = vsel %vm162, %v152, 2102212464
    %v165 = vsel %vm161, %v149, %v164
    %v166 = vsel %vm160, %v163, %v165
    %v167 = vsel %vm159, %v146, %v149
    %v168 = vsel %vm162, %v155, 920167782
    %v169 = vsel %vm161, %v152, %v168
    %v170 = vsel %vm160, %v167, %v169
    %v171 = vsel %vm159, %v149, %v152
    %v172 = vsel %vm162, %v158, 1326507024
    %v173 = vsel %vm161, %v155, %v172
    %v174 = vsel %vm160, %v171, %v173
    %v175 = vshll.u32 %v135, 8
    %v176 = vmul.u32.u64.compose %v175, %v174
    %v177 = vextract.low.u32 %v176
    %v178 = vextract.high.u32 %v176
    %v179 = vmul.u32.u64.compose %v175, %v170
    %v180 = vextract.low.u32 %v179
    %v181 = vextract.high.u32 %v179
    %v182 = vmul.u32 %v175, %v166
    %v183 = vadd.s32 %v178, %v180
    %vm184 = vc.u32 %v178, %v180
    %v185 = vadd.s32 %v181, 1
    %v186 = vsel %vm184, %v185, %v181
    %v187 = vadd.s32 %v182, %v186
    %v188 = vadd.s32 %v187, 536870912
    %v189 = vshrl.u32 %v188, 30
    %v190 = vshll.u32 %v189, 30
    %v191 = vsub.s32 %v187, %v190
    %vm192 = vcmp.lt.s32.totalorder %v191, 0
    %v193 = vsub.s32 0, %v191
    %v194 = vsel %vm192, %v193, %v191
    %v195 = vclz %v194
    %v196 = vsub.s32 %v195, 2
    %vm197 = vcmp.gt.s32.totalorder 0, %v196
    %v198 = vsel %vm197, 0, %v196
    %v199 = vsub.s32 32, %v198
    %v200 = vshll.u32 %v191, %v198
    %v201 = vshrl.u32 %v183, %v199
    %v202 = vor.u32 %v200, %v201
    %v203 = vsub.s32 4294967266, %v198
    %v204 = vadd.s32 %v203, 127
    %v205 = vshll.u32 %v204, 23
    %v206 = vor.u32 4788187, %v205
    %v207 = vand.u32 2147483647, %v206
    %v209 = vcvt.s32.f32 %v202
    %v210 = vmul.f32 %v209, %v207
    %v211 = vxor.u32 %v210, 2147483648
    %v212 = vsel %vm129, %v211, %v210
    %v213 = vsub.s32 4, %v189
    %v214 = vsel %vm129, %v213, %v189
    %v215 = vsel %vm128, %v21, %v212
    %v216 = vsel %vm128, 0, %v214
    %v217 = vcosq.f32.pop %v215
    %v218 = vsinq.f32.pop %v215
    %vm219 = vweird.f32 %v21
    %v220 = vand.u32 %v216, 3
    %vm221 = vcmp.lt.s32.totalorder %v220, 2
    %vm222 = vcmp.eq.s32.totalorder %v220, 0
    %v223 = vxor.u32 %v218, 2147483648
    %v224 = vsel %vm222, %v217, %v223
    %vm225 = vcmp.eq.s32.totalorder %v220, 2
    %v226 = vxor.u32 %v217, 2147483648
    %v227 = vsel %vm225, %v226, %v218
    %v228 = vsel %vm221, %v224, %v227
    %v229 = vsel %vm219, nan, %v228
    %s230 = scalar_lea.vmem [#allocation5], 8
    %231 = vst [vmem:[%s230] sm:$0xff] %v126
    %s232 = scalar_lea.vmem [#allocation5], 16
    %233 = vst [vmem:[%s232] sm:$0xff] %v229
    %v234 = vmul.f32 %v126, 2.0
    %v235 = vmul.f32 %v234, %v229
    %v236 = vmul.f32 %v234, %v126
    %v237 = vsub.f32 1.0, %v236
    %s238 = scalar_lea.vmem [#allocation5], 24
    %239 = vst [vmem:[%s238] sm:$0xff] %v235
    %s240 = scalar_lea.vmem [#allocation5], 32
    %241 = vst [vmem:[%s240] sm:$0xff] %v237
    %v242 = vmul.f32 %v235, 2.0
    %v243 = vmul.f32 %v242, %v237
    %v244 = vmul.f32 %v242, %v235
    %v245 = vsub.f32 1.0, %v244
    %s246 = scalar_lea.vmem [#allocation5], 40
    %247 = vst [vmem:[%s246] sm:$0xff] %v243
    %s248 = scalar_lea.vmem [#allocation5], 48
    %249 = vst [vmem:[%s248] sm:$0xff] %v245
    %v250 = vmul.f32 %v21, 8.0
    %v251 = vand.u32 2147483647, %v250
    %vm252 = vcmp.le.f32.partialorder %v251, 0.7853982
    %vm253 = vcmp.lt.s32.totalorder %v250, 0
    %v254 = vand.u32 %v250, 2139095040
    %v255 = vshrl.u32 %v254, 23
    %v256 = vsub.s32 %v255, 127
    %v257 = vand.u32 2147483647, %v250
    %v258 = vand.u32 %v257, 8388607
    %v259 = vor.u32 %v258, 8388608
    %v260 = vsub.s32 0, %v259
    %v261 = vadd.s32 %v256, 1
    %vm262 = vcmp.gt.s32.totalorder %v261, 0
    %v263 = vsel %vm262, %v261, 0
    %v264 = vshrl.u32 %v263, 5
    %v265 = vand.u32 %v263, 31
    %v266 = vsub.s32 32, %v265
    %v267 = vshrl.u32 683565275, %v266
    %v268 = vshll.u32 683565275, %v265
    %v269 = vshrl.u32 2475754826, %v266
    %v270 = vor.u32 %v268, %v269
    %v271 = vshll.u32 2475754826, %v265
    %v272 = vshrl.u32 2131351028, %v266
    %v273 = vor.u32 %v271, %v272
    %v274 = vshll.u32 2131351028, %v265
    %v275 = vshrl.u32 2102212464, %v266
    %v276 = vor.u32 %v274, %v275
    %v277 = vshll.u32 2102212464, %v265
    %v278 = vshrl.u32 920167782, %v266
    %v279 = vor.u32 %v277, %v278
    %v280 = vshll.u32 920167782, %v265
    %v281 = vshrl.u32 1326507024, %v266
    %v282 = vor.u32 %v280, %v281
    %vm283 = vcmp.lt.s32.totalorder %v264, 1
    %vm284 = vcmp.lt.s32.totalorder %v264, 2
    %vm285 = vcmp.lt.s32.totalorder %v264, 3
    %vm286 = vcmp.lt.s32.totalorder %v264, 4
    %v287 = vsel %vm283, %v267, %v270
    %v288 = vsel %vm286, %v276, 2102212464
    %v289 = vsel %vm285, %v273, %v288
    %v290 = vsel %vm284, %v287, %v289
    %v291 = vsel %vm283, %v270, %v273
    %v292 = vsel %vm286, %v279, 920167782
    %v293 = vsel %vm285, %v276, %v292
    %v294 = vsel %vm284, %v291, %v293
    %v295 = vsel %vm283, %v273, %v276
    %v296 = vsel %vm286, %v282, 1326507024
    %v297 = vsel %vm285, %v279, %v296
    %v298 = vsel %vm284, %v295, %v297
    %v299 = vshll.u32 %v259, 8
    %v300 = vmul.u32.u64.compose %v299, %v298
    %v301 = vextract.low.u32 %v300
    %v302 = vextract.high.u32 %v300
    %v303 = vmul.u32.u64.compose %v299, %v294
    %v304 = vextract.low.u32 %v303
    %v305 = vextract.high.u32 %v303
    %v306 = vmul.u32 %v299, %v290
    %v307 = vadd.s32 %v302, %v304
    %vm308 = vc.u32 %v302, %v304
    %v309 = vadd.s32 %v305, 1
    %v310 = vsel %vm308, %v309, %v305
    %v311 = vadd.s32 %v306, %v310
    %v312 = vadd.s32 %v311, 536870912
    %v313 = vshrl.u32 %v312, 30
    %v314 = vshll.u32 %v313, 30
    %v315 = vsub.s32 %v311, %v314
    %vm316 = vcmp.lt.s32.totalorder %v315, 0
    %v317 = vsub.s32 0, %v315
    %v318 = vsel %vm316, %v317, %v315
    %v319 = vclz %v318
    %v320 = vsub.s32 %v319, 2
    %vm321 = vcmp.gt.s32.totalorder 0, %v320
    %v322 = vsel %vm321, 0, %v320
    %v323 = vsub.s32 32, %v322
    %v324 = vshll.u32 %v315, %v322
    %v325 = vshrl.u32 %v307, %v323
    %v326 = vor.u32 %v324, %v325
    %v327 = vsub.s32 4294967266, %v322
    %v328 = vadd.s32 %v327, 127
    %v329 = vshll.u32 %v328, 23
    %v330 = vor.u32 4788187, %v329
    %v331 = vand.u32 2147483647, %v330
    %v333 = vcvt.s32.f32 %v326
    %v334 = vmul.f32 %v333, %v331
    %v335 = vxor.u32 %v334, 2147483648
    %v336 = vsel %vm253, %v335, %v334
    %v337 = vsub.s32 4, %v313
    %v338 = vsel %vm253, %v337, %v313
    %v339 = vsel %vm252, %v250, %v336
    %v340 = vsel %vm252, 0, %v338
    %v341 = vcosq.f32.pop %v339
    %v342 = vsinq.f32.pop %v339
    %vm343 = vweird.f32 %v250
    %v344 = vadd.s32 %v340, 3
    %v345 = vand.u32 %v344, 3
    %vm346 = vcmp.lt.s32.totalorder %v345, 2
    %vm347 = vcmp.eq.s32.totalorder %v345, 0
    %v348 = vxor.u32 %v342, 2147483648
    %v349 = vsel %vm347, %v341, %v348
    %vm350 = vcmp.eq.s32.totalorder %v345, 2
    %v351 = vxor.u32 %v341, 2147483648
    %v352 = vsel %vm350, %v351, %v342
    %v353 = vsel %vm346, %v349, %v352
    %v354 = vsel %vm343, nan, %v353
    %v355 = vand.u32 2147483647, %v250
    %vm356 = vcmp.le.f32.partialorder %v355, 0.7853982
    %vm357 = vcmp.lt.s32.totalorder %v250, 0
    %v358 = vand.u32 %v250, 2139095040
    %v359 = vshrl.u32 %v358, 23
    %v360 = vsub.s32 %v359, 127
    %v361 = vand.u32 2147483647, %v250
    %v362 = vand.u32 %v361, 8388607
    %v363 = vor.u32 %v362, 8388608
    %v364 = vsub.s32 0, %v363
    %v365 = vadd.s32 %v360, 1
    %vm366 = vcmp.gt.s32.totalorder %v365, 0
    %v367 = vsel %vm366, %v365, 0
    %v368 = vshrl.u32 %v367, 5
    %v369 = vand.u32 %v367, 31
    %v370 = vsub.s32 32, %v369
    %v371 = vshrl.u32 683565275, %v370
    %v372 = vshll.u32 683565275, %v369
    %v373 = vshrl.u32 2475754826, %v370
    %v374 = vor.u32 %v372, %v373
    %v375 = vshll.u32 2475754826, %v369
    %v376 = vshrl.u32 2131351028, %v370
    %v377 = vor.u32 %v375, %v376
    %v378 = vshll.u32 2131351028, %v369
    %v379 = vshrl.u32 2102212464, %v370
    %v380 = vor.u32 %v378, %v379
    %v381 = vshll.u32 2102212464, %v369
    %v382 = vshrl.u32 920167782, %v370
    %v383 = vor.u32 %v381, %v382
    %v384 = vshll.u32 920167782, %v369
    %v385 = vshrl.u32 1326507024, %v370
    %v386 = vor.u32 %v384, %v385
    %vm387 = vcmp.lt.s32.totalorder %v368, 1
    %vm388 = vcmp.lt.s32.totalorder %v368, 2
    %vm389 = vcmp.lt.s32.totalorder %v368, 3
    %vm390 = vcmp.lt.s32.totalorder %v368, 4
    %v391 = vsel %vm387, %v371, %v374
    %v392 = vsel %vm390, %v380, 2102212464
    %v393 = vsel %vm389, %v377, %v392
    %v394 = vsel %vm388, %v391, %v393
    %v395 = vsel %vm387, %v374, %v377
    %v396 = vsel %vm390, %v383, 920167782
    %v397 = vsel %vm389, %v380, %v396
    %v398 = vsel %vm388, %v395, %v397
    %v399 = vsel %vm387, %v377, %v380
    %v400 = vsel %vm390, %v386, 1326507024
    %v401 = vsel %vm389, %v383, %v400
    %v402 = vsel %vm388, %v399, %v401
    %v403 = vshll.u32 %v363, 8
    %v404 = vmul.u32.u64.compose %v403, %v402
    %v405 = vextract.low.u32 %v404
    %v406 = vextract.high.u32 %v404
    %v407 = vmul.u32.u64.compose %v403, %v398
    %v408 = vextract.low.u32 %v407
    %v409 = vextract.high.u32 %v407
    %v410 = vmul.u32 %v403, %v394
    %v411 = vadd.s32 %v406, %v408
    %vm412 = vc.u32 %v406, %v408
    %v413 = vadd.s32 %v409, 1
    %v414 = vsel %vm412, %v413, %v409
    %v415 = vadd.s32 %v410, %v414
    %v416 = vadd.s32 %v415, 536870912
    %v417 = vshrl.u32 %v416, 30
    %v418 = vshll.u32 %v417, 30
    %v419 = vsub.s32 %v415, %v418
    %vm420 = vcmp.lt.s32.totalorder %v419, 0
    %v421 = vsub.s32 0, %v419
    %v422 = vsel %vm420, %v421, %v419
    %v423 = vclz %v422
    %v424 = vsub.s32 %v423, 2
    %vm425 = vcmp.gt.s32.totalorder 0, %v424
    %v426 = vsel %vm425, 0, %v424
    %v427 = vsub.s32 32, %v426
    %v428 = vshll.u32 %v419, %v426
    %v429 = vshrl.u32 %v411, %v427
    %v430 = vor.u32 %v428, %v429
    %v431 = vsub.s32 4294967266, %v426
    %v432 = vadd.s32 %v431, 127
    %v433 = vshll.u32 %v432, 23
    %v434 = vor.u32 4788187, %v433
    %v435 = vand.u32 2147483647, %v434
    %v437 = vcvt.s32.f32 %v430
    %v438 = vmul.f32 %v437, %v435
    %v439 = vxor.u32 %v438, 2147483648
    %v440 = vsel %vm357, %v439, %v438
    %v441 = vsub.s32 4, %v417
    %v442 = vsel %vm357, %v441, %v417
    %v443 = vsel %vm356, %v250, %v440
    %v444 = vsel %vm356, 0, %v442
    %v445 = vcosq.f32.pop %v443
    %v446 = vsinq.f32.pop %v443
    %vm447 = vweird.f32 %v250
    %v448 = vand.u32 %v444, 3
    %vm449 = vcmp.lt.s32.totalorder %v448, 2
    %vm450 = vcmp.eq.s32.totalorder %v448, 0
    %v451 = vxor.u32 %v446, 2147483648
    %v452 = vsel %vm450, %v445, %v451
    %vm453 = vcmp.eq.s32.totalorder %v448, 2
    %v454 = vxor.u32 %v445, 2147483648
    %v455 = vsel %vm453, %v454, %v446
    %v456 = vsel %vm449, %v452, %v455
    %v457 = vsel %vm447, nan, %v456
    %s458 = scalar_lea.vmem [#allocation5], 56
    %459 = vst [vmem:[%s458] sm:$0xff] %v354
    %s460 = scalar_lea.vmem [#allocation5], 64
    %461 = vst [vmem:[%s460] sm:$0xff] %v457
    // Predicated region
    $region10: #{tpu_custom_call.1} parent=1 // pred_check
      _
    $region11: #{tpu_custom_call.1} parent=1 // pred_check_branch
      %463 = sbr.rel (0) target = $region13
    $region12: #{tpu_custom_call.1} parent=1 // pred_region
      %s465 = ssub.s32 1152, 1152
      %466 = vsyncadd [#allocation4], %s465
      %s467 = sshll.u32 [#allocation5], 4
      %s468 = int_to_ptr.vmem [resolvable:$true] %s467
      %473 = dma.vmem_to_hbm [thread:$0]  %s468, 1152, %s1, [#allocation4], 128, 128, 8
    $region13: #{tpu_custom_call.1} parent=1 // pred_fallthru
      _
    // Predicated region
    $region14: #{tpu_custom_call.1} parent=1 // pred_check
      _
    $region15: #{tpu_custom_call.1} parent=1 // pred_check_branch
      %475 = sbr.rel (0) target = $region17
    $region16: #{tpu_custom_call.1} parent=1 // pred_region
      %476 = dma.done [#allocation4], 1152
    $region17: #{tpu_custom_call.1} parent=1 // pred_fallthru
      _
    %477 = vsyncpa [#allocation3], 1
    %478 = vsyncpa [#allocation4], 1

</llo_original>
